<compile_context>
chip_gen: v5e
topology: v5e:2x2
jax: 0.10.0
libtpu: 0.0.40
codegen_flags: <defaults>
</compile_context>

<pallas_src>
import jax
import jax.numpy as jnp
from jax import lax
from jax.experimental import pallas as pl
from jax.experimental.pallas import tpu as pltpu


def _dsconv_kernel(wf_ref, slab_ref, o_ref):
    # wf_ref:   (Cout_pad, K_pad)      fused depthwise*pointwise weight (+ bias col)
    # slab_ref: (1, K_pad, M_pad)      pre-built transposed im2col slab, one image
    # o_ref:    (1, Cout_pad, M_pad)   lane-dense, NCHW-layout output
    # Single MXU matmul; bias folded in via the ones-row of the slab.
    o_ref[0] = jnp.dot(wf_ref[...], slab_ref[0],
                       preferred_element_type=jnp.float32).astype(o_ref.dtype)


def depthwise_separable_conv(x_nchw, dw_w, dw_b, pw_w, pw_b):
    """x_nchw: (B, Cin, H, W); dw_w: (Cin, 1, 3, 3); dw_b: (Cin,);
    pw_w: (Cout, Cin, 1, 1); pw_b: (Cout,). Returns (B, Cout, H-2, W-2)."""
    B, Cin, H, W = x_nchw.shape
    Cout = pw_w.shape[0]
    Hout, Wout = H - 2, W - 2
    M = Hout * Wout
    K = 9 * Cin
    dtype = x_nchw.dtype

    M_pad = ((M + 127) // 128) * 128       # lane-dense long (spatial) axis
    K_pad = 128                            # padded contraction dim (>= K + 1 bias row)
    Cout_pad = ((Cout + 7) // 8) * 8       # sublane-aligned output channels
    assert K + 1 <= K_pad, "K=9*Cin too large for single 128-deep contraction tile"

    # --- im2col hoisted to the wrapper (XLA, outside the kernel). -------------
    # slab_t[b, tap*Cin + c, m] = x[b, c, m//Wout + kh, m%Wout + kw], tap = kh*3+kw
    taps = jnp.stack(
        [x_nchw[:, :, kh:kh + Hout, kw:kw + Wout].reshape(B, Cin, M)
         for kh in range(3) for kw in range(3)],
        axis=1)                                                  # (B, 9, Cin, M)
    slab_t = taps.reshape(B, K, M).astype(dtype)
    slab_t = jnp.pad(slab_t, ((0, 0), (0, K_pad - K), (0, M_pad - M)))
    slab_t = slab_t.at[:, K, :].set(jnp.asarray(1.0, dtype))     # bias ones-row

    # --- Fuse depthwise + pointwise weights (f32 math, cast once). ------------
    #   wf[o, tap*Cin + c] = dw_w[c, 0, kh, kw] * pw_w[o, c]
    #   wf[o, K]           = pw_b[o] + sum_c pw_w[o, c] * dw_b[c]
    dw_taps = jnp.transpose(dw_w[:, 0, :, :], (1, 2, 0)).reshape(9, Cin)  # [tap, c]
    pw = pw_w[:, :, 0, 0]                                                  # (Cout, Cin)
    wf = (dw_taps[None, :, :].astype(jnp.float32)
          * pw[:, None, :].astype(jnp.float32)).reshape(Cout, K)
    bf = pw_b.astype(jnp.float32) + pw.astype(jnp.float32) @ dw_b.astype(jnp.float32)
    wf_p = jnp.zeros((Cout_pad, K_pad), jnp.float32)
    wf_p = wf_p.at[:Cout, :K].set(wf).at[:Cout, K].set(bf).astype(dtype)

    out = pl.pallas_call(
        _dsconv_kernel,
        out_shape=jax.ShapeDtypeStruct((B, Cout_pad, M_pad), dtype),
        grid_spec=pltpu.PrefetchScalarGridSpec(
            num_scalar_prefetch=0,
            grid=(B,),
            in_specs=[
                pl.BlockSpec((Cout_pad, K_pad), lambda b: (0, 0)),
                pl.BlockSpec((1, K_pad, M_pad), lambda b: (b, 0, 0)),
            ],
            out_specs=pl.BlockSpec((1, Cout_pad, M_pad), lambda b: (b, 0, 0)),
        ),
        compiler_params=pltpu.CompilerParams(
            dimension_semantics=("parallel",)),
    )(wf_p, slab_t)

    # Padding strip + reshape; layout is already NCHW, no transpose needed.
    return out[:, :Cout, :M].reshape(B, Cout, Hout, Wout)


def _reference(x_nchw, dw_w, dw_b, pw_w, pw_b):
    """Pure-JAX reference matching nn.Conv2d semantics (NCHW, valid padding)."""
    Cin = x_nchw.shape[1]
    y = lax.conv_general_dilated(
        x_nchw, dw_w, window_strides=(1, 1), padding="VALID",
        dimension_numbers=("NCHW", "OIHW", "NCHW"), feature_group_count=Cin)
    y = y + dw_b.reshape(1, -1, 1, 1)
    z = lax.conv_general_dilated(
        y, pw_w, window_strides=(1, 1), padding="VALID",
        dimension_numbers=("NCHW", "OIHW", "NCHW"))
    return z + pw_b.reshape(1, -1, 1, 1)


if __name__ == "__main__":
    B, Cin, Cout, H, W = 2, 4, 8, 16, 16

    key = jax.random.PRNGKey(0)
    kx, kdw, kdb, kpw, kpb = jax.random.split(key, 5)

    x = jax.random.normal(kx, (B, Cin, H, W), dtype=jnp.float32)
    # Deterministic synthetic parameters (shapes follow nn.Conv2d defaults).
    dw_w = jax.random.normal(kdw, (Cin, 1, 3, 3), dtype=jnp.float32) * 0.2
    dw_b = jax.random.normal(kdb, (Cin,), dtype=jnp.float32) * 0.1
    pw_w = jax.random.normal(kpw, (Cout, Cin, 1, 1), dtype=jnp.float32) * 0.2
    pw_b = jax.random.normal(kpb, (Cout,), dtype=jnp.float32) * 0.1

    out = depthwise_separable_conv(x, dw_w, dw_b, pw_w, pw_b)
    out = jax.block_until_ready(out)

    ref = _reference(x, dw_w, dw_b, pw_w, pw_b)
    assert out.shape == (B, Cout, H - 2, W - 2), out.shape
    # Fusion reorders the summation (single K=9*Cin f32 contraction), so allow
    # ~1e-6-level differences vs the two-stage reference.
    assert jnp.allclose(out, ref, atol=1e-4, rtol=1e-4), "mismatch vs reference"

    print("KERNEL_OK")
</pallas_src>

<mosaic_0001>
module attributes {stable_mosaic.version = 11 : i64} {
  func.func @_dsconv_kernel(%arg0: i32, %arg1: memref<8x128xf32, #tpu.memory_space<vmem>>, %arg2: memref<1x128x256xf32, #tpu.memory_space<vmem>>, %arg3: memref<1x8x256xf32, #tpu.memory_space<vmem>>) attributes {dimension_semantics = [#tpu.dimension_semantics<parallel>], iteration_bounds = array<i64: 2>, scalar_prefetch = 0 : i64, scratch_operands = 0 : i64, tpu.core_type = #tpu.core_type<tc>, window_params = [{pipeline_mode = #tpu.pipeline_mode<synchronous>, transform_indices = @transform_0, window_bounds = array<i64: 8, 128>}, {transform_indices = @transform_1, window_bounds = array<i64: 1, 128, 256>}, {transform_indices = @transform_2, window_bounds = array<i64: 1, 8, 256>}]} {
    %c0 = arith.constant 0 : index
    %c0_0 = arith.constant 0 : index
    %0 = vector.load %arg1[%c0, %c0_0] : memref<8x128xf32, #tpu.memory_space<vmem>>, vector<8x128xf32>
    %c0_1 = arith.constant 0 : index
    %c0_2 = arith.constant 0 : index
    %c0_3 = arith.constant 0 : index
    %1 = vector.load %arg2[%c0_1, %c0_2, %c0_3] : memref<1x128x256xf32, #tpu.memory_space<vmem>>, vector<1x128x256xf32>
    %2 = vector.shape_cast %1 : vector<1x128x256xf32> to vector<128x256xf32>
    %cst = arith.constant dense<0.000000e+00> : vector<8x256xf32>
    %3 = tpu.matmul %0, %2, %cst {dimension_numbers = #tpu.dot_dimension_numbers<[1], [0], [0], [1], [0, 0, 1, 1], [], []>} : vector<8x128xf32>, vector<128x256xf32>, vector<8x256xf32> -> vector<8x256xf32>
    %c0_4 = arith.constant 0 : index
    %c0_5 = arith.constant 0 : index
    %c0_6 = arith.constant 0 : index
    %4 = vector.load %arg3[%c0_4, %c0_5, %c0_6] : memref<1x8x256xf32, #tpu.memory_space<vmem>>, vector<1x8x256xf32>
    %5 = vector.shape_cast %4 : vector<1x8x256xf32> to vector<8x256xf32>
    %6 = vector.shape_cast %3 : vector<8x256xf32> to vector<1x8x256xf32>
    tpu.vector_store %arg3[%c0_4, %c0_5, %c0_6], %6 {strides = array<i32>} : memref<1x8x256xf32, #tpu.memory_space<vmem>>, vector<1x8x256xf32>,
    return
  }
  func.func @transform_0(%arg0: i32) -> (i32, i32) {
    %c0_i32 = arith.constant 0 : i32
    %c0_i32_0 = arith.constant 0 : i32
    %c0_i32_1 = arith.constant 0 : i32
    return %c0_i32, %c0_i32_0 : i32, i32
  }
  func.func @transform_1(%arg0: i32) -> (i32, i32, i32) {
    %c0_i32 = arith.constant 0 : i32
    %c0_i32_0 = arith.constant 0 : i32
    %c0_i32_1 = arith.constant 0 : i32
    return %arg0, %c0_i32, %c0_i32_0 : i32, i32, i32
  }
  func.func @transform_2(%arg0: i32) -> (i32, i32, i32) {
    %c0_i32 = arith.constant 0 : i32
    %c0_i32_0 = arith.constant 0 : i32
    %c0_i32_1 = arith.constant 0 : i32
    return %arg0, %c0_i32, %c0_i32_0 : i32, i32, i32
  }
}

</mosaic_0001>

<llo_original>
// kernel: tpu_custom_call.1
$region0: #{tpu_custom_call.1}
  #allocation0 [shape = 'u32[]', space=smem, size = 0x4, offset = 0x4, fixed_abs, tag = 'smem constant byte address 0x4 - core index']
  #allocation1 [shape = 'u32[72,128]{1,0:T(1,128)}', space=vmem, size = 0x9000, scoped, tag = 'internal scratch']
  %s0 = inlined_call_operand.hbm [shape: f32[8,128], index: 0, kind: input, shape index: {}]
  %s1 = inlined_call_operand.hbm [shape: f32[2,128,256], index: 1, kind: input, shape index: {}]
  %s2 = inlined_call_operand.hbm [shape: f32[2,8,256], index: 2, kind: output, shape index: {}]
  %s3 = sld [smem:[#allocation0]]
  $region49: #{tpu_custom_call.1} parent=0
    _
  %s5 = ssub.s32 1, %s3
  %s6 = scalar_select 0, %s5, %s3
  $region1: #{tpu_custom_call.1} parent=0
    #allocation2 [shape = 'u8[4096]{0}', space=vmem, size = 0x1000, scoped, tag = 'input window, operand 0, single buffered']
    #allocation3 [shape = 's32[2]{0}', space=sflag, size = 0x8, scoped, tag = 'scoped memory for tpu_custom_call.1']
    #allocation4 [shape = 's32[2]{0}', space=sflag, size = 0x8, scoped, tag = 'scoped memory for tpu_custom_call.1']
    #allocation5 [shape = 'u8[262144]{0}', space=vmem, size = 0x40000, scoped, tag = 'input window, operand 1']
    #allocation6 [shape = 's32[2]{0}', space=sflag, size = 0x8, scoped, tag = 'scoped memory for tpu_custom_call.1']
    #allocation7 [shape = 'u8[16384]{0}', space=vmem, size = 0x4000, scoped, tag = 'output window, operand 0']
    %7 = vsyncpa [#allocation3], 0
    %8 = vsyncpa [#allocation6], 0
    %s9 = scalar_lea.sflag [#allocation6], 1
    %10 = vsyncpa %s9, 0
    %11 = vsyncpa [#allocation4], 0
    %s12 = scalar_lea.sflag [#allocation4], 1
    %13 = vsyncpa %s12, 0
    loop: start=0, step=1, limit=4
    $region2: #{tpu_custom_call.1} parent=1 // loop_pre_header
      _
    $region3: #{tpu_custom_call.1} parent=1 // loop_header
      %s15 = sphi 0, %s19
      %p16 = scmp.ge.s32.totalorder %s15, 4
      %s23 = sphi 0, %s23
      %s25 = sphi 0, %s23
      %s26 = sphi 0, %s25
      %s40 = sphi 0, %s26
      %s46 = sphi 0, %s48
      %s49 = sphi 0, %s46
      %s50 = sphi 0, %s49
      %s66 = sphi 0, %s50
      %s72 = sphi 0, %s74
      %s75 = sphi 0, %s72
      %s76 = sphi 0, %s75
      %s92 = sphi 0, %s76
    $region4: #{tpu_custom_call.1} parent=1 // loop_header_branch
      %18 = sbr.rel (%p16) target = $region8
    $region5: #{tpu_custom_call.1} parent=1 // loop_body
      %s20 = ssub.s32 %s15, 1
      %s21 = ssub.s32 %s15, 2
      %s22 = sadd.s32 %s15, 1
      %s24 = sadd.s32 %s23, 1
      %p27 = scmp.eq.s32.totalorder %s15, 1
      %p28 = scmp.ne.s32.totalorder %s23, %s25
      %p29 = scmp.eq.s32.totalorder %s15, 0
      %p30 = por %p28, %p29
      %p31 = scmp.ne.s32.totalorder %s23, %s25
      %p32 = scmp.eq.s32.totalorder %s20, 1
      %p33 = por %p31, %p32
      %p34 = scmp.ne.s32.totalorder %s25, %s26
      %p35 = scmp.eq.s32.totalorder %s20, 0
      %p36 = por %p34, %p35
      %p37 = scmp.ne.s32.totalorder %s25, %s26
      %p38 = scmp.eq.s32.totalorder %s21, 1
      %p39 = por %p37, %p38
      %p41 = scmp.ne.s32.totalorder %s26, %s40
      %p42 = scmp.eq.s32.totalorder %s21, 0
      %p43 = por %p41, %p42
      %s44 = ssub.s32 %s15, %s22
      %p45 = scmp.eq.s32.totalorder %s44, 0
      %s47 = sadd.s32 %s46, 1
      %s48 = scalar_select %p45, %s46, %s47
      %p51 = pneg %p45
      %p52 = scmp.eq.s32.totalorder %s15, 1
      %p53 = por %p51, %p52
      %p54 = scmp.ne.s32.totalorder %s46, %s49
      %p55 = scmp.eq.s32.totalorder %s15, 0
      %p56 = por %p54, %p55
      %p57 = scmp.ne.s32.totalorder %s46, %s49
      %p58 = scmp.eq.s32.totalorder %s20, 1
      %p59 = por %p57, %p58
      %p60 = scmp.ne.s32.totalorder %s49, %s50
      %p61 = scmp.eq.s32.totalorder %s20, 0
      %p62 = por %p60, %p61
      %p63 = scmp.ne.s32.totalorder %s49, %s50
      %p64 = scmp.eq.s32.totalorder %s21, 1
      %p65 = por %p63, %p64
      %p67 = scmp.ne.s32.totalorder %s50, %s66
      %p68 = scmp.eq.s32.totalorder %s21, 0
      %p69 = por %p67, %p68
      %s70 = ssub.s32 %s15, %s22
      %p71 = scmp.eq.s32.totalorder %s70, 0
      %s73 = sadd.s32 %s72, 1
      %s74 = scalar_select %p71, %s72, %s73
      %p77 = pneg %p71
      %p78 = scmp.eq.s32.totalorder %s15, 1
      %p79 = por %p77, %p78
      %p80 = scmp.ne.s32.totalorder %s72, %s75
      %p81 = scmp.eq.s32.totalorder %s15, 0
      %p82 = por %p80, %p81
      %p83 = scmp.ne.s32.totalorder %s72, %s75
      %p84 = scmp.eq.s32.totalorder %s20, 1
      %p85 = por %p83, %p84
      %p86 = scmp.ne.s32.totalorder %s75, %s76
      %p87 = scmp.eq.s32.totalorder %s20, 0
      %p88 = por %p86, %p87
      %p89 = scmp.ne.s32.totalorder %s75, %s76
      %p90 = scmp.eq.s32.totalorder %s21, 1
      %p91 = por %p89, %p90
      %p93 = scmp.ne.s32.totalorder %s76, %s92
      %p94 = scmp.eq.s32.totalorder %s21, 0
      %p95 = por %p93, %p94
      %p96 = scmp.le.s32.totalorder 1, %s15
      %p97 = scmp.lt.s32.totalorder %s15, 3
      %p98 = pnand %p96, %p97
      %p99 = pneg %p98
      // Predicated region
      $region9: #{tpu_custom_call.1} parent=5 // pred_check
        _
      $region10: #{tpu_custom_call.1} parent=5 // pred_check_branch
        %101 = sbr.rel (%p98) target = $region12
      $region11: #{tpu_custom_call.1} parent=5 // pred_region
        %s102 = ssub.s32 %s15, 1
        // Predicated region
        $region13: #{tpu_custom_call.1} parent=11 // pred_check
          %p103 = pneg %p36
        $region14: #{tpu_custom_call.1} parent=11 // pred_check_branch
          %105 = sbr.rel (%p103) target = $region16
        $region15: #{tpu_custom_call.1} parent=11 // pred_region
          %107 = vsyncadd [#allocation3], 0
          %s109 = sshll.u32 %s0, 4
          %s110 = int_to_ptr.hbm [resolvable:$true] %s109
          %s111 = sshll.u32 [#allocation2], 4
          %s112 = int_to_ptr.vmem [resolvable:$true] %s111
          %114 = dma.hbm_to_vmem [thread:$0]  %s110, 128, %s112, [#allocation3]
        $region16: #{tpu_custom_call.1} parent=11 // pred_fallthru
          _
      $region12: #{tpu_custom_call.1} parent=5 // pred_fallthru
        _
      %p115 = scmp.lt.s32.totalorder %s15, 2
      // Predicated region
      $region17: #{tpu_custom_call.1} parent=5 // pred_check
        %p116 = pneg %p115
      $region18: #{tpu_custom_call.1} parent=5 // pred_check_branch
        %118 = sbr.rel (%p116) target = $region20
      $region19: #{tpu_custom_call.1} parent=5 // pred_region
        // Predicated region
        $region21: #{tpu_custom_call.1} parent=19 // pred_check
          %p119 = pneg %p56
        $region22: #{tpu_custom_call.1} parent=19 // pred_check_branch
          %121 = sbr.rel (%p119) target = $region24
        $region23: #{tpu_custom_call.1} parent=19 // pred_region
          %s122 = sand.u32 %s46, 1
          %s123 = scalar_lea.sflag [#allocation6], %s122
          %s124 = sand.u32 %s46, 1
          %s125 = smul.addr %s124, 256
          %s126 = scalar_lea.vmem [#allocation5], %s125
          %128 = vsyncadd %s123, 0
          %s129 = smul.addr %s15, 32
          %s130 = smul.addr %s129, 8
          %s131 = scalar_lea.hbm %s1, %s130
          %s132 = sshll.u32 %s131, 4
          %s133 = int_to_ptr.hbm [resolvable:$true] %s132
          %s134 = sshll.u32 %s126, 4
          %s135 = int_to_ptr.vmem [resolvable:$true] %s134
          %140 = dma.hbm_to_vmem [thread:$0]  %s133, 4096, %s135, %s123, 256, 256, 16
        $region24: #{tpu_custom_call.1} parent=19 // pred_fallthru
          _
      $region20: #{tpu_custom_call.1} parent=5 // pred_fallthru
        _
      %p141 = scmp.le.s32.totalorder 1, %s15
      %p142 = scmp.lt.s32.totalorder %s15, 3
      %p143 = pnand %p141, %p142
      %p144 = pneg %p143
      // Predicated region
      $region25: #{tpu_custom_call.1} parent=5 // pred_check
        _
      $region26: #{tpu_custom_call.1} parent=5 // pred_check_branch
        %146 = sbr.rel (%p143) target = $region28
      $region27: #{tpu_custom_call.1} parent=5 // pred_region
        %s147 = ssub.s32 %s15, 1
        // Predicated region
        $region29: #{tpu_custom_call.1} parent=27 // pred_check
          %p148 = pneg %p36
        $region30: #{tpu_custom_call.1} parent=27 // pred_check_branch
          %150 = sbr.rel (%p148) target = $region32
        $region31: #{tpu_custom_call.1} parent=27 // pred_region
          %152 = dma.done [#allocation3], 128
        $region32: #{tpu_custom_call.1} parent=27 // pred_fallthru
          _
        %s153 = sand.u32 %s49, 1
        %s154 = scalar_lea.sflag [#allocation6], %s153
        %s155 = sand.u32 %s49, 1
        %s156 = smul.addr %s155, 256
        %s157 = scalar_lea.vmem [#allocation5], %s156
        // Predicated region
        $region33: #{tpu_custom_call.1} parent=27 // pred_check
          %p158 = pneg %p62
        $region34: #{tpu_custom_call.1} parent=27 // pred_check_branch
          %160 = sbr.rel (%p158) target = $region36
        $region35: #{tpu_custom_call.1} parent=27 // pred_region
          %162 = dma.done %s154, 4096
        $region36: #{tpu_custom_call.1} parent=27 // pred_fallthru
          _
        %p163 = pneg %p36
        %p164 = pneg %p33
        %s165 = sand.u32 %s49, 1
        %s166 = scalar_lea.sflag [#allocation6], %s165
        %s167 = sand.u32 %s49, 1
        %s168 = smul.addr %s167, 256
        %s169 = scalar_lea.vmem [#allocation5], %s168
        %p170 = pneg %p62
        %p171 = pneg %p59
        %p172 = pneg %p88
        %p173 = pneg %p85
        %s174 = sand.u32 %s75, 1
        %s175 = scalar_lea.sflag [#allocation4], %s174
        %s176 = sand.u32 %s75, 1
        %s177 = smul.addr %s176, 16
        %s178 = scalar_lea.vmem [#allocation7], %s177
        %v179 = vld [vmem:[#allocation2] sm:$0xff]
        %v180 = vld [vmem:[%s157] sm:$0xff]
        %v181 = vld [vmem:[%s157 + $0x8] sm:$0xff]
        %v182 = vld [vmem:[%s157 + $0x10] sm:$0xff]
        %v183 = vld [vmem:[%s157 + $0x18] sm:$0xff]
        %v184 = vld [vmem:[%s157 + $0x20] sm:$0xff]
        %v185 = vld [vmem:[%s157 + $0x28] sm:$0xff]
        %v186 = vld [vmem:[%s157 + $0x30] sm:$0xff]
        %v187 = vld [vmem:[%s157 + $0x38] sm:$0xff]
        %v188 = vld [vmem:[%s157 + $0x40] sm:$0xff]
        %v189 = vld [vmem:[%s157 + $0x48] sm:$0xff]
        %v190 = vld [vmem:[%s157 + $0x50] sm:$0xff]
        %v191 = vld [vmem:[%s157 + $0x58] sm:$0xff]
        %v192 = vld [vmem:[%s157 + $0x60] sm:$0xff]
        %v193 = vld [vmem:[%s157 + $0x68] sm:$0xff]
        %v194 = vld [vmem:[%s157 + $0x70] sm:$0xff]
        %v195 = vld [vmem:[%s157 + $0x78] sm:$0xff]
        %v196 = vld [vmem:[%s157 + $0x80] sm:$0xff]
        %v197 = vld [vmem:[%s157 + $0x88] sm:$0xff]
        %v198 = vld [vmem:[%s157 + $0x90] sm:$0xff]
        %v199 = vld [vmem:[%s157 + $0x98] sm:$0xff]
        %v200 = vld [vmem:[%s157 + $0xa0] sm:$0xff]
        %v201 = vld [vmem:[%s157 + $0xa8] sm:$0xff]
        %v202 = vld [vmem:[%s157 + $0xb0] sm:$0xff]
        %v203 = vld [vmem:[%s157 + $0xb8] sm:$0xff]
        %v204 = vld [vmem:[%s157 + $0xc0] sm:$0xff]
        %v205 = vld [vmem:[%s157 + $0xc8] sm:$0xff]
        %v206 = vld [vmem:[%s157 + $0xd0] sm:$0xff]
        %v207 = vld [vmem:[%s157 + $0xd8] sm:$0xff]
        %v208 = vld [vmem:[%s157 + $0xe0] sm:$0xff]
        %v209 = vld [vmem:[%s157 + $0xe8] sm:$0xff]
        %v210 = vld [vmem:[%s157 + $0xf0] sm:$0xff]
        %v211 = vld [vmem:[%s157 + $0xf8] sm:$0xff]
        %212 = vmatpush.msra.mxu0 %v210
        %213 = vmatpush.msra.mxu0 %v208
        %214 = vmatpush.msra.mxu0 %v206
        %215 = vmatpush.msra.mxu0 %v204
        %216 = vmatpush.msra.mxu0 %v202
        %217 = vmatpush.msra.mxu0 %v200
        %218 = vmatpush.msra.mxu0 %v198
        %219 = vmatpush.msra.mxu0 %v196
        %220 = vmatpush.msra.mxu0 %v194
        %221 = vmatpush.msra.mxu0 %v192
        %222 = vmatpush.msra.mxu0 %v190
        %223 = vmatpush.msra.mxu0 %v188
        %224 = vmatpush.msra.mxu0 %v186
        %225 = vmatpush.msra.mxu0 %v184
        %226 = vmatpush.msra.mxu0 %v182
        %227 = vmatpush.msra.mxu0 %v180
        %228 = vmatmul.f32.gmra.mxu0 %v179
        %v229 = vpop.f32.mrf.mxu0
        %v230 = vadd.f32 0.0, %v229
        %231 = vdwg.mxu0
        %232 = vmatpush.msra.mxu0 %v211
        %233 = vmatpush.msra.mxu0 %v209
        %234 = vmatpush.msra.mxu0 %v207
        %235 = vmatpush.msra.mxu0 %v205
        %236 = vmatpush.msra.mxu0 %v203
        %237 = vmatpush.msra.mxu0 %v201
        %238 = vmatpush.msra.mxu0 %v199
        %239 = vmatpush.msra.mxu0 %v197
        %240 = vmatpush.msra.mxu0 %v195
        %241 = vmatpush.msra.mxu0 %v193
        %242 = vmatpush.msra.mxu0 %v191
        %243 = vmatpush.msra.mxu0 %v189
        %244 = vmatpush.msra.mxu0 %v187
        %245 = vmatpush.msra.mxu0 %v185
        %246 = vmatpush.msra.mxu0 %v183
        %247 = vmatpush.msra.mxu0 %v181
        %248 = vmatmul.f32.gmra.mxu0 %v179
        %v249 = vpop.f32.mrf.mxu0
        %v250 = vadd.f32 0.0, %v249
        %251 = vdwg.mxu0
        %252 = vst [vmem:[%s178] sm:$0xff] %v230
        %253 = vst [vmem:[%s178 + $0x8] sm:$0xff] %v250
        %s254 = sand.u32 %s75, 1
        %s255 = scalar_lea.sflag [#allocation4], %s254
        %s256 = sand.u32 %s75, 1
        %s257 = smul.addr %s256, 16
        %s258 = scalar_lea.vmem [#allocation7], %s257
        // Predicated region
        $region37: #{tpu_custom_call.1} parent=27 // pred_check
          %p259 = pneg %p85
        $region38: #{tpu_custom_call.1} parent=27 // pred_check_branch
          %261 = sbr.rel (%p259) target = $region40
        $region39: #{tpu_custom_call.1} parent=27 // pred_region
          %263 = vsyncadd %s255, 0
          %s264 = smul.addr %s20, 2
          %s265 = smul.addr %s264, 8
          %s266 = scalar_lea.hbm %s2, %s265
          %s268 = sshll.u32 %s258, 4
          %s269 = int_to_ptr.vmem [resolvable:$true] %s268
          %s270 = sshll.u32 %s266, 4
          %s271 = int_to_ptr.hbm [resolvable:$true] %s270
          %273 = dma.vmem_to_hbm [thread:$0]  %s269, 256, %s271, %s255
        $region40: #{tpu_custom_call.1} parent=27 // pred_fallthru
          _
      $region28: #{tpu_custom_call.1} parent=5 // pred_fallthru
        _
      %p274 = scmp.le.s32.totalorder 2, %s15
      // Predicated region
      $region41: #{tpu_custom_call.1} parent=5 // pred_check
        %p275 = pneg %p274
      $region42: #{tpu_custom_call.1} parent=5 // pred_check_branch
        %277 = sbr.rel (%p275) target = $region44
      $region43: #{tpu_custom_call.1} parent=5 // pred_region
        %s278 = ssub.s32 %s15, 2
        // Predicated region
        $region45: #{tpu_custom_call.1} parent=43 // pred_check
          %p279 = pneg %p91
        $region46: #{tpu_custom_call.1} parent=43 // pred_check_branch
          %281 = sbr.rel (%p279) target = $region48
        $region47: #{tpu_custom_call.1} parent=43 // pred_region
          %s282 = sand.u32 %s76, 1
          %s283 = scalar_lea.sflag [#allocation4], %s282
          %s284 = sand.u32 %s76, 1
          %s285 = smul.addr %s284, 16
          %s286 = scalar_lea.vmem [#allocation7], %s285
          %288 = dma.done %s283, 256
        $region48: #{tpu_custom_call.1} parent=43 // pred_fallthru
          _
      $region44: #{tpu_custom_call.1} parent=5 // pred_fallthru
        _
    $region6: #{tpu_custom_call.1} parent=1 // loop_footer
      %s19 = sadd.s32 1, %s15
    $region7: #{tpu_custom_call.1} parent=1 // loop_footer_branch
      %14 = sbr.rel target = $region3
    $region8: #{tpu_custom_call.1} parent=1 // loop_exit
      _
    %289 = vsyncpa [#allocation3], 1
    %s290 = scalar_lea.sflag [#allocation3], 1
    %291 = vsyncpa %s290, 1
    %292 = vsyncpa [#allocation6], 1
    %s293 = scalar_lea.sflag [#allocation6], 1
    %294 = vsyncpa %s293, 1
    %295 = vsyncpa [#allocation4], 1
    %s296 = scalar_lea.sflag [#allocation4], 1
    %297 = vsyncpa %s296, 1

</llo_original>
